<compile_context>
chip_gen: v5e
topology: v5e:2x2
jax: 0.10.0
libtpu: 0.0.40
codegen_flags: <defaults>
</compile_context>

<pallas_src>
import functools

import jax
import jax.numpy as jnp
from jax.experimental import pallas as pl
from jax.experimental.pallas import tpu as pltpu

NEG_SLOPE = 0.2  # NLayerLeakyMLP uses nn.LeakyReLU(0.2)


def _leaky(h):
    return jnp.where(h >= 0, h, NEG_SLOPE * h)


def _dleaky(h):
    return jnp.where(h >= 0, 1.0, NEG_SLOPE)


def _round_up(v, m):
    return (v + m - 1) // m * m


def np_transition_kernel(inp_ref, w0_ref, w0x_ref, b0_ref,
                         w1_ref, b1_ref, w2_ref, b2_ref,
                         wf_ref, bf_ref, out_ref):
    """One grid step == one tile of TN windows; all D MLPs fused (block-diag).

    Activation `a` and forward-mode tangent `t` (wrt xx_i) are propagated with
    two bf16 MXU dots per layer sharing the same weight ref; f32 accumulation;
    f32 elementwise.  No [a; t] concatenation / VMEM round-trips.
    """
    d = bf_ref.shape[1]                                        # = latent_size

    inp = inp_ref[...]                                         # (TN, K0p) bf16

    # ---- layer 0: one lane-dense matmul for all D MLPs ----
    h = jnp.dot(inp, w0_ref[...],
                preferred_element_type=jnp.float32) + b0_ref[...]
    a = _leaky(h)                                              # f32 (TN, DH)
    # tangent seed: d h_block_i / d xx_i = w0x_i (per block)
    t = w0x_ref[...] * _dleaky(h)                              # f32 (TN, DH)

    # ---- hidden layers 1 & 2: two dots per layer, same resident weight ----
    for w_ref, b_ref in ((w1_ref, b1_ref), (w2_ref, b2_ref)):
        w = w_ref[...]                                         # bf16 (DH, DH)
        ha = jnp.dot(a.astype(jnp.bfloat16), w,
                     preferred_element_type=jnp.float32) + b_ref[...]
        ht = jnp.dot(t.astype(jnp.bfloat16), w,
                     preferred_element_type=jnp.float32)
        a = _leaky(ha)
        t = ht * _dleaky(ha)

    # ---- final block-diagonal head: residuals and d res_i / d xx_i ----
    wf = wf_ref[...]                                           # bf16 (DH, D)
    res = jnp.dot(a.astype(jnp.bfloat16), wf,
                  preferred_element_type=jnp.float32) + bf_ref[...]
    dres = jnp.dot(t.astype(jnp.bfloat16), wf,
                   preferred_element_type=jnp.float32)
    # single merged output tile: [residuals | log|d res_i / d xx_i|]
    out_ref[...] = jnp.concatenate([res, jnp.log(jnp.abs(dres))], axis=-1)
    del d


def init_params(key, lags, latent_size, hidden_dim):
    """Deterministic stacked per-dim parameters for the `latent_size` MLPs."""
    in_feat = lags * latent_size + 1
    D, H = latent_size, hidden_dim
    ks = jax.random.split(key, 8)
    scale0 = 1.0 / jnp.sqrt(in_feat)
    scaleh = 1.0 / jnp.sqrt(H)
    # weights stored transposed: (in, out)
    w0 = jax.random.normal(ks[0], (D, in_feat, H), jnp.float32) * scale0
    b0 = jax.random.normal(ks[1], (D, 1, H), jnp.float32) * scale0
    w1 = jax.random.normal(ks[2], (D, H, H), jnp.float32) * scaleh
    b1 = jax.random.normal(ks[3], (D, 1, H), jnp.float32) * scaleh
    w2 = jax.random.normal(ks[4], (D, H, H), jnp.float32) * scaleh
    b2 = jax.random.normal(ks[5], (D, 1, H), jnp.float32) * scaleh
    wf = jax.random.normal(ks[6], (D, H, 1), jnp.float32) * scaleh
    bf = jax.random.normal(ks[7], (D, 1, 1), jnp.float32) * scaleh
    w0y = w0[:, :-1, :]               # (D, L*D, H)
    w0x = w0[:, -1:, :]               # (D, 1, H)
    return dict(w0y=w0y, w0x=w0x, b0=b0, w1=w1, b1=b1, w2=w2, b2=b2,
                wf=wf, bf=bf)


def pack_params(params):
    """Pack the D independent MLPs into block-diagonal fused matrices.

    Matmul weights are stored in bfloat16 (MXU operands); the tangent seed and
    biases stay f32 (used in f32 elementwise / accumulation).  The layer-0
    weight rows are zero-padded from K0 = (L+1)*D up to a multiple of 16.
    """
    w0y, w0x, b0 = params["w0y"], params["w0x"], params["b0"]
    w1, b1 = params["w1"], params["b1"]
    w2, b2 = params["w2"], params["b2"]
    wf, bf = params["wf"], params["bf"]
    D, LD, H = w0y.shape
    DH = D * H
    K0 = LD + D
    K0p = _round_up(K0, 16)
    eye = jnp.eye(D, dtype=w0y.dtype)

    # layer-0 weight for the fused input [yy | xx]:
    #   yy rows: column block i holds w0y_i (shared yy hits all blocks)
    #   xx rows: row i has w0x_i in column block i only (block-diagonal)
    w0_yy = jnp.transpose(w0y, (1, 0, 2)).reshape(LD, DH)
    w0_xx = jnp.einsum("ij,jh->ijh", eye, w0x[:, 0, :]).reshape(D, DH)
    w0_all = jnp.concatenate([w0_yy, w0_xx], axis=0)           # (K0, DH)
    if K0p != K0:
        w0_all = jnp.pad(w0_all, ((0, K0p - K0), (0, 0)))      # (K0p, DH)

    w0x_flat = w0x.reshape(1, DH)
    b0_flat = b0.reshape(1, DH)
    w1_bd = jnp.einsum("ij,ipq->ipjq", eye, w1).reshape(DH, DH)
    w2_bd = jnp.einsum("ij,ipq->ipjq", eye, w2).reshape(DH, DH)
    b1_flat = b1.reshape(1, DH)
    b2_flat = b2.reshape(1, DH)
    wf_bd = jnp.einsum("ij,ip->ipj", eye, wf[:, :, 0]).reshape(DH, D)
    bf_flat = bf.reshape(1, D)
    return dict(w0=w0_all.astype(jnp.bfloat16),
                w0x=w0x_flat,                       # f32 (tangent seed)
                b0=b0_flat,                         # f32
                w1=w1_bd.astype(jnp.bfloat16), b1=b1_flat,
                w2=w2_bd.astype(jnp.bfloat16), b2=b2_flat,
                wf=wf_bd.astype(jnp.bfloat16), bf=bf_flat)


@functools.partial(jax.jit, static_argnames=("lags",))
def np_transition_prior(x, fused, *, lags):
    """x: (B, T, D) float32 -> (residuals (B, T-L, D), logabsdet (B,))."""
    B, T, D = x.shape
    L = lags
    S = T - L                       # windows per batch element
    N = B * S
    K0 = (L + 1) * D
    K0p = fused["w0"].shape[0]
    DH = fused["w1"].shape[0]

    # [yy | xx] assembled directly from L+1 shifted slices (no stacked
    # windows).  column l*D + d == x[b, s+l, d]; first L*D columns = yy,
    # last D = xx.  Feature axis zero-padded to K0p for aligned MXU K-passes.
    inp = jnp.concatenate([x[:, l:l + S, :] for l in range(L + 1)], axis=-1)
    inp = inp.reshape(N, K0).astype(jnp.bfloat16)
    if K0p != K0:
        inp = jnp.pad(inp, ((0, 0), (0, K0p - K0)))

    # Tile the window axis: TN multiple of 16 (bf16 sublane packing), capped
    # at 2048, and chosen so there are >= 2 grid steps when possible (v7x has
    # two TensorCores that shard the "parallel" grid axis).
    if N <= 16:
        TN = 16
    else:
        TN = min(2048, _round_up((N + 1) // 2, 16))
    N_pad = _round_up(N, TN)
    if N_pad != N:
        inp = jnp.pad(inp, ((0, N_pad - N), (0, 0)))

    grid = (N_pad // TN,)

    def tile_spec(shape):            # blocks indexed by the N-tile
        return pl.BlockSpec(shape, lambda n: (n, 0))

    def full_spec(shape):            # weights: constant block index -> resident
        return pl.BlockSpec(shape, lambda n: (0, 0))

    # advisory cost estimate (MXU flops dominate; log is the only transcendental)
    flops = 2 * N_pad * (K0p * DH + 2 * 2 * DH * DH + 2 * DH * D)
    bytes_accessed = (
        N_pad * K0p * 2                              # bf16 input tiles
        + N_pad * 2 * D * 4                          # f32 output tiles
        + (K0p * DH + 2 * DH * DH + DH * D) * 2      # bf16 weights
        + (4 * DH + D) * 4)                          # f32 biases + tangent seed
    cost = pl.CostEstimate(flops=flops, transcendentals=N_pad * D,
                           bytes_accessed=bytes_accessed)

    out = pl.pallas_call(
        np_transition_kernel,
        out_shape=jax.ShapeDtypeStruct((N_pad, 2 * D), jnp.float32),
        grid_spec=pltpu.PrefetchScalarGridSpec(
            num_scalar_prefetch=0,
            grid=grid,
            in_specs=[
                tile_spec((TN, K0p)),       # [yy | xx] tile (bf16)
                full_spec((K0p, DH)),       # fused layer-0 weight (bf16)
                full_spec((1, DH)),         # w0x (tangent seed, f32)
                full_spec((1, DH)),         # b0 (f32)
                full_spec((DH, DH)),        # w1 (block diagonal, bf16)
                full_spec((1, DH)),         # b1 (f32)
                full_spec((DH, DH)),        # w2 (block diagonal, bf16)
                full_spec((1, DH)),         # b2 (f32)
                full_spec((DH, D)),         # wf (block diagonal head, bf16)
                full_spec((1, D)),          # bf (f32)
            ],
            out_specs=tile_spec((TN, 2 * D)),   # [residuals | log|det|]
        ),
        compiler_params=pltpu.CompilerParams(
            dimension_semantics=("parallel",)),
        cost_estimate=cost,
    )(inp, fused["w0"], fused["w0x"], fused["b0"],
      fused["w1"], fused["b1"], fused["w2"], fused["b2"],
      fused["wf"], fused["bf"])

    residuals = out[:N, :D].reshape(B, S, D)
    sum_lad = jnp.sum(out[:N, D:], axis=-1).reshape(B, S).sum(axis=1)   # (B,)
    return residuals, sum_lad


def _reference(x, params, lags):
    """Pure-JAX f32 reference of the same math on the un-fused per-dim params."""
    B, T, D = x.shape
    L = lags
    S = T - L
    N = B * S
    win = jnp.stack([x[:, k:k + S] for k in range(L + 1)], axis=2)
    yy = win[:, :, :L, :].reshape(N, L * D)
    xx = win[:, :, L, :].reshape(N, D)
    res_cols, lad_cols = [], []
    for i in range(D):
        inp = jnp.concatenate([yy, xx[:, i:i + 1]], axis=-1)  # (N, L*D+1)
        w0 = jnp.concatenate([params["w0y"][i], params["w0x"][i]], axis=0)
        a = inp
        t = jnp.zeros_like(inp).at[:, -1].set(1.0)
        for w, b in ((w0, params["b0"][i]), (params["w1"][i], params["b1"][i]),
                     (params["w2"][i], params["b2"][i])):
            h = a @ w + b
            t = t @ w
            a = _leaky(h)
            t = t * _dleaky(h)
        out = a @ params["wf"][i] + params["bf"][i]
        dout = t @ params["wf"][i]
        res_cols.append(out)
        lad_cols.append(jnp.log(jnp.abs(dout)))
    residuals = jnp.concatenate(res_cols, axis=-1).reshape(B, S, D)
    sum_lad = jnp.sum(jnp.concatenate(lad_cols, axis=-1), axis=-1)
    sum_lad = jnp.sum(sum_lad.reshape(B, S), axis=1)
    return residuals, sum_lad


if __name__ == "__main__":
    # small, deterministic config (D*H = 128 -> one full vreg / MXU width)
    lags, latent_size, hidden_dim = 2, 4, 32
    batch, length = 2, 8

    key = jax.random.PRNGKey(0)
    kx, kp = jax.random.split(key)
    x = jax.random.normal(kx, (batch, length, latent_size), jnp.float32)
    params = init_params(kp, lags, latent_size, hidden_dim)
    fused = pack_params(params)

    residuals, logabsdet = np_transition_prior(x, fused, lags=lags)
    residuals = jax.block_until_ready(residuals)
    logabsdet = jax.block_until_ready(logabsdet)

    assert residuals.shape == (batch, length - lags, latent_size)
    assert logabsdet.shape == (batch,)

    # sanity check against a pure-JAX f32 reference of the same math.
    # residuals: bf16 matmul error is ~1% relative -> 2e-2 is plenty.
    # logabsdet: log amplifies bf16 error near LeakyReLU kinks (sign of h can
    # flip under ~0.3% perturbation), so the per-batch sum is checked at 5e-2.
    ref_res, ref_lad = _reference(x, params, lags)
    assert jnp.allclose(residuals, ref_res, rtol=2e-2, atol=2e-2)
    assert jnp.allclose(logabsdet, ref_lad, rtol=5e-2, atol=5e-2)

    print("KERNEL_OK")
</pallas_src>

<mosaic_0001>
module attributes {stable_mosaic.version = 11 : i64} {
  func.func @np_transition_kernel(%arg0: i32, %arg1: memref<16x16xbf16, #tpu.memory_space<vmem>>, %arg2: memref<16x128xbf16, #tpu.memory_space<vmem>>, %arg3: memref<1x128xf32, #tpu.memory_space<vmem>>, %arg4: memref<1x128xf32, #tpu.memory_space<vmem>>, %arg5: memref<128x128xbf16, #tpu.memory_space<vmem>>, %arg6: memref<1x128xf32, #tpu.memory_space<vmem>>, %arg7: memref<128x128xbf16, #tpu.memory_space<vmem>>, %arg8: memref<1x128xf32, #tpu.memory_space<vmem>>, %arg9: memref<128x4xbf16, #tpu.memory_space<vmem>>, %arg10: memref<1x4xf32, #tpu.memory_space<vmem>>, %arg11: memref<16x8xf32, #tpu.memory_space<vmem>>) attributes {dimension_semantics = [#tpu.dimension_semantics<parallel>], iteration_bounds = array<i64: 1>, scalar_prefetch = 0 : i64, scratch_operands = 0 : i64, tpu.core_type = #tpu.core_type<tc>, window_params = [{transform_indices = @transform_0, window_bounds = array<i64: 16, 16>}, {pipeline_mode = #tpu.pipeline_mode<synchronous>, transform_indices = @transform_1, window_bounds = array<i64: 16, 128>}, {pipeline_mode = #tpu.pipeline_mode<synchronous>, transform_indices = @transform_2, window_bounds = array<i64: 1, 128>}, {pipeline_mode = #tpu.pipeline_mode<synchronous>, transform_indices = @transform_3, window_bounds = array<i64: 1, 128>}, {pipeline_mode = #tpu.pipeline_mode<synchronous>, transform_indices = @transform_4, window_bounds = array<i64: 128, 128>}, {pipeline_mode = #tpu.pipeline_mode<synchronous>, transform_indices = @transform_5, window_bounds = array<i64: 1, 128>}, {pipeline_mode = #tpu.pipeline_mode<synchronous>, transform_indices = @transform_6, window_bounds = array<i64: 128, 128>}, {pipeline_mode = #tpu.pipeline_mode<synchronous>, transform_indices = @transform_7, window_bounds = array<i64: 1, 128>}, {pipeline_mode = #tpu.pipeline_mode<synchronous>, transform_indices = @transform_8, window_bounds = array<i64: 128, 4>}, {pipeline_mode = #tpu.pipeline_mode<synchronous>, transform_indices = @transform_9, window_bounds = array<i64: 1, 4>}, {transform_indices = @transform_10, window_bounds = array<i64: 16, 8>}]} {
    %c0 = arith.constant 0 : index
    %c0_0 = arith.constant 0 : index
    %0 = vector.load %arg1[%c0, %c0_0] : memref<16x16xbf16, #tpu.memory_space<vmem>>, vector<16x16xbf16>
    %c0_1 = arith.constant 0 : index
    %c0_2 = arith.constant 0 : index
    %1 = vector.load %arg2[%c0_1, %c0_2] : memref<16x128xbf16, #tpu.memory_space<vmem>>, vector<16x128xbf16>
    %cst = arith.constant dense<0.000000e+00> : vector<16x128xf32>
    %2 = tpu.matmul %0, %1, %cst {dimension_numbers = #tpu.dot_dimension_numbers<[1], [0], [0], [1], [0, 0, 1, 1], [], []>} : vector<16x16xbf16>, vector<16x128xbf16>, vector<16x128xf32> -> vector<16x128xf32>
    %c0_3 = arith.constant 0 : index
    %c0_4 = arith.constant 0 : index
    %3 = vector.load %arg4[%c0_3, %c0_4] : memref<1x128xf32, #tpu.memory_space<vmem>>, vector<1x128xf32>
    %4 = vector.broadcast %3 : vector<1x128xf32> to vector<16x128xf32>
    %5 = arith.addf %2, %4 : vector<16x128xf32>
    %cst_5 = arith.constant 0.000000e+00 : f32
    %6 = vector.broadcast %cst_5 : f32 to vector<16x128xf32>
    %7 = arith.cmpf oge, %5, %6 : vector<16x128xf32>
    %cst_6 = arith.constant 2.000000e-01 : f32
    %8 = vector.broadcast %cst_6 : f32 to vector<16x128xf32>
    %9 = arith.mulf %8, %5 : vector<16x128xf32>
    %10 = arith.select %7, %5, %9 : vector<16x128xi1>, vector<16x128xf32>
    %c0_7 = arith.constant 0 : index
    %c0_8 = arith.constant 0 : index
    %11 = vector.load %arg3[%c0_7, %c0_8] : memref<1x128xf32, #tpu.memory_space<vmem>>, vector<1x128xf32>
    %cst_9 = arith.constant 0.000000e+00 : f32
    %12 = vector.broadcast %cst_9 : f32 to vector<16x128xf32>
    %13 = arith.cmpf oge, %5, %12 : vector<16x128xf32>
    %cst_10 = arith.constant 1.000000e+00 : f32
    %cst_11 = arith.constant 2.000000e-01 : f32
    %14 = vector.broadcast %cst_10 : f32 to vector<16x128xf32>
    %15 = vector.broadcast %cst_11 : f32 to vector<16x128xf32>
    %16 = arith.select %13, %14, %15 : vector<16x128xi1>, vector<16x128xf32>
    %17 = vector.broadcast %11 : vector<1x128xf32> to vector<16x128xf32>
    %18 = arith.mulf %17, %16 : vector<16x128xf32>
    %c0_12 = arith.constant 0 : index
    %c0_13 = arith.constant 0 : index
    %19 = vector.load %arg5[%c0_12, %c0_13] : memref<128x128xbf16, #tpu.memory_space<vmem>>, vector<128x128xbf16>
    %20 = arith.truncf %10 : vector<16x128xf32> to vector<16x128xbf16>
    %cst_14 = arith.constant dense<0.000000e+00> : vector<16x128xf32>
    %21 = tpu.matmul %20, %19, %cst_14 {dimension_numbers = #tpu.dot_dimension_numbers<[1], [0], [0], [1], [0, 0, 1, 1], [], []>} : vector<16x128xbf16>, vector<128x128xbf16>, vector<16x128xf32> -> vector<16x128xf32>
    %c0_15 = arith.constant 0 : index
    %c0_16 = arith.constant 0 : index
    %22 = vector.load %arg6[%c0_15, %c0_16] : memref<1x128xf32, #tpu.memory_space<vmem>>, vector<1x128xf32>
    %23 = vector.broadcast %22 : vector<1x128xf32> to vector<16x128xf32>
    %24 = arith.addf %21, %23 : vector<16x128xf32>
    %25 = arith.truncf %18 : vector<16x128xf32> to vector<16x128xbf16>
    %cst_17 = arith.constant dense<0.000000e+00> : vector<16x128xf32>
    %26 = tpu.matmul %25, %19, %cst_17 {dimension_numbers = #tpu.dot_dimension_numbers<[1], [0], [0], [1], [0, 0, 1, 1], [], []>} : vector<16x128xbf16>, vector<128x128xbf16>, vector<16x128xf32> -> vector<16x128xf32>
    %cst_18 = arith.constant 0.000000e+00 : f32
    %27 = vector.broadcast %cst_18 : f32 to vector<16x128xf32>
    %28 = arith.cmpf oge, %24, %27 : vector<16x128xf32>
    %cst_19 = arith.constant 2.000000e-01 : f32
    %29 = vector.broadcast %cst_19 : f32 to vector<16x128xf32>
    %30 = arith.mulf %29, %24 : vector<16x128xf32>
    %31 = arith.select %28, %24, %30 : vector<16x128xi1>, vector<16x128xf32>
    %cst_20 = arith.constant 0.000000e+00 : f32
    %32 = vector.broadcast %cst_20 : f32 to vector<16x128xf32>
    %33 = arith.cmpf oge, %24, %32 : vector<16x128xf32>
    %cst_21 = arith.constant 1.000000e+00 : f32
    %cst_22 = arith.constant 2.000000e-01 : f32
    %34 = vector.broadcast %cst_21 : f32 to vector<16x128xf32>
    %35 = vector.broadcast %cst_22 : f32 to vector<16x128xf32>
    %36 = arith.select %33, %34, %35 : vector<16x128xi1>, vector<16x128xf32>
    %37 = arith.mulf %26, %36 : vector<16x128xf32>
    %c0_23 = arith.constant 0 : index
    %c0_24 = arith.constant 0 : index
    %38 = vector.load %arg7[%c0_23, %c0_24] : memref<128x128xbf16, #tpu.memory_space<vmem>>, vector<128x128xbf16>
    %39 = arith.truncf %31 : vector<16x128xf32> to vector<16x128xbf16>
    %cst_25 = arith.constant dense<0.000000e+00> : vector<16x128xf32>
    %40 = tpu.matmul %39, %38, %cst_25 {dimension_numbers = #tpu.dot_dimension_numbers<[1], [0], [0], [1], [0, 0, 1, 1], [], []>} : vector<16x128xbf16>, vector<128x128xbf16>, vector<16x128xf32> -> vector<16x128xf32>
    %c0_26 = arith.constant 0 : index
    %c0_27 = arith.constant 0 : index
    %41 = vector.load %arg8[%c0_26, %c0_27] : memref<1x128xf32, #tpu.memory_space<vmem>>, vector<1x128xf32>
    %42 = vector.broadcast %41 : vector<1x128xf32> to vector<16x128xf32>
    %43 = arith.addf %40, %42 : vector<16x128xf32>
    %44 = arith.truncf %37 : vector<16x128xf32> to vector<16x128xbf16>
    %cst_28 = arith.constant dense<0.000000e+00> : vector<16x128xf32>
    %45 = tpu.matmul %44, %38, %cst_28 {dimension_numbers = #tpu.dot_dimension_numbers<[1], [0], [0], [1], [0, 0, 1, 1], [], []>} : vector<16x128xbf16>, vector<128x128xbf16>, vector<16x128xf32> -> vector<16x128xf32>
    %cst_29 = arith.constant 0.000000e+00 : f32
    %46 = vector.broadcast %cst_29 : f32 to vector<16x128xf32>
    %47 = arith.cmpf oge, %43, %46 : vector<16x128xf32>
    %cst_30 = arith.constant 2.000000e-01 : f32
    %48 = vector.broadcast %cst_30 : f32 to vector<16x128xf32>
    %49 = arith.mulf %48, %43 : vector<16x128xf32>
    %50 = arith.select %47, %43, %49 : vector<16x128xi1>, vector<16x128xf32>
    %cst_31 = arith.constant 0.000000e+00 : f32
    %51 = vector.broadcast %cst_31 : f32 to vector<16x128xf32>
    %52 = arith.cmpf oge, %43, %51 : vector<16x128xf32>
    %cst_32 = arith.constant 1.000000e+00 : f32
    %cst_33 = arith.constant 2.000000e-01 : f32
    %53 = vector.broadcast %cst_32 : f32 to vector<16x128xf32>
    %54 = vector.broadcast %cst_33 : f32 to vector<16x128xf32>
    %55 = arith.select %52, %53, %54 : vector<16x128xi1>, vector<16x128xf32>
    %56 = arith.mulf %45, %55 : vector<16x128xf32>
    %c0_34 = arith.constant 0 : index
    %c0_35 = arith.constant 0 : index
    %57 = vector.load %arg9[%c0_34, %c0_35] : memref<128x4xbf16, #tpu.memory_space<vmem>>, vector<128x4xbf16>
    %58 = arith.truncf %50 : vector<16x128xf32> to vector<16x128xbf16>
    %cst_36 = arith.constant dense<0.000000e+00> : vector<16x4xf32>
    %59 = tpu.matmul %58, %57, %cst_36 {dimension_numbers = #tpu.dot_dimension_numbers<[1], [0], [0], [1], [0, 0, 1, 1], [], []>} : vector<16x128xbf16>, vector<128x4xbf16>, vector<16x4xf32> -> vector<16x4xf32>
    %c0_37 = arith.constant 0 : index
    %c0_38 = arith.constant 0 : index
    %60 = vector.load %arg10[%c0_37, %c0_38] : memref<1x4xf32, #tpu.memory_space<vmem>>, vector<1x4xf32>
    %61 = vector.broadcast %60 : vector<1x4xf32> to vector<16x4xf32>
    %62 = arith.addf %59, %61 : vector<16x4xf32>
    %63 = arith.truncf %56 : vector<16x128xf32> to vector<16x128xbf16>
    %cst_39 = arith.constant dense<0.000000e+00> : vector<16x4xf32>
    %64 = tpu.matmul %63, %57, %cst_39 {dimension_numbers = #tpu.dot_dimension_numbers<[1], [0], [0], [1], [0, 0, 1, 1], [], []>} : vector<16x128xbf16>, vector<128x4xbf16>, vector<16x4xf32> -> vector<16x4xf32>
    %65 = math.absf %64 : vector<16x4xf32>
    %66 = math.log %65 : vector<16x4xf32>
    %67 = tpu.concatenate %62, %66 in 1 : vector<16x4xf32>, vector<16x4xf32> -> vector<16x8xf32>
    %c0_40 = arith.constant 0 : index
    %c0_41 = arith.constant 0 : index
    %68 = vector.load %arg11[%c0_40, %c0_41] : memref<16x8xf32, #tpu.memory_space<vmem>>, vector<16x8xf32>
    tpu.vector_store %arg11[%c0_40, %c0_41], %67 {strides = array<i32>} : memref<16x8xf32, #tpu.memory_space<vmem>>, vector<16x8xf32>,
    return
  }
  func.func @transform_0(%arg0: i32) -> (i32, i32) {
    %c0_i32 = arith.constant 0 : i32
    %c0_i32_0 = arith.constant 0 : i32
    return %arg0, %c0_i32 : i32, i32
  }
  func.func @transform_1(%arg0: i32) -> (i32, i32) {
    %c0_i32 = arith.constant 0 : i32
    %c0_i32_0 = arith.constant 0 : i32
    %c0_i32_1 = arith.constant 0 : i32
    return %c0_i32, %c0_i32_0 : i32, i32
  }
  func.func @transform_2(%arg0: i32) -> (i32, i32) {
    %c0_i32 = arith.constant 0 : i32
    %c0_i32_0 = arith.constant 0 : i32
    %c0_i32_1 = arith.constant 0 : i32
    return %c0_i32, %c0_i32_0 : i32, i32
  }
  func.func @transform_3(%arg0: i32) -> (i32, i32) {
    %c0_i32 = arith.constant 0 : i32
    %c0_i32_0 = arith.constant 0 : i32
    %c0_i32_1 = arith.constant 0 : i32
    return %c0_i32, %c0_i32_0 : i32, i32
  }
  func.func @transform_4(%arg0: i32) -> (i32, i32) {
    %c0_i32 = arith.constant 0 : i32
    %c0_i32_0 = arith.constant 0 : i32
    %c0_i32_1 = arith.constant 0 : i32
    return %c0_i32, %c0_i32_0 : i32, i32
  }
  func.func @transform_5(%arg0: i32) -> (i32, i32) {
    %c0_i32 = arith.constant 0 : i32
    %c0_i32_0 = arith.constant 0 : i32
    %c0_i32_1 = arith.constant 0 : i32
    return %c0_i32, %c0_i32_0 : i32, i32
  }
  func.func @transform_6(%arg0: i32) -> (i32, i32) {
    %c0_i32 = arith.constant 0 : i32
    %c0_i32_0 = arith.constant 0 : i32
    %c0_i32_1 = arith.constant 0 : i32
    return %c0_i32, %c0_i32_0 : i32, i32
  }
  func.func @transform_7(%arg0: i32) -> (i32, i32) {
    %c0_i32 = arith.constant 0 : i32
    %c0_i32_0 = arith.constant 0 : i32
    %c0_i32_1 = arith.constant 0 : i32
    return %c0_i32, %c0_i32_0 : i32, i32
  }
  func.func @transform_8(%arg0: i32) -> (i32, i32) {
    %c0_i32 = arith.constant 0 : i32
    %c0_i32_0 = arith.constant 0 : i32
    %c0_i32_1 = arith.constant 0 : i32
    return %c0_i32, %c0_i32_0 : i32, i32
  }
  func.func @transform_9(%arg0: i32) -> (i32, i32) {
    %c0_i32 = arith.constant 0 : i32
    %c0_i32_0 = arith.constant 0 : i32
    %c0_i32_1 = arith.constant 0 : i32
    return %c0_i32, %c0_i32_0 : i32, i32
  }
  func.func @transform_10(%arg0: i32) -> (i32, i32) {
    %c0_i32 = arith.constant 0 : i32
    %c0_i32_0 = arith.constant 0 : i32
    return %arg0, %c0_i32 : i32, i32
  }
}

</mosaic_0001>

<llo_original>
// kernel: np_transition_prior.1
$region0: #{np_transition_prior.1}
  #allocation0 [shape = 'u32[]', space=smem, size = 0x4, offset = 0x4, fixed_abs, tag = 'smem constant byte address 0x4 - core index']
  #allocation1 [shape = 'u32[72,128]{1,0:T(1,128)}', space=vmem, size = 0x9000, scoped, tag = 'internal scratch']
  %s0 = inlined_call_operand.vmem [shape: bf16[16,16], index: 0, kind: input, shape index: {}]
  %s1 = inlined_call_operand.vmem [shape: bf16[16,128], index: 1, kind: input, shape index: {}]
  %s2 = inlined_call_operand.vmem [shape: f32[1,128], index: 2, kind: input, shape index: {}]
  %s3 = inlined_call_operand.vmem [shape: f32[1,128], index: 3, kind: input, shape index: {}]
  %s4 = inlined_call_operand.vmem [shape: bf16[128,128], index: 4, kind: input, shape index: {}]
  %s5 = inlined_call_operand.vmem [shape: f32[1,128], index: 5, kind: input, shape index: {}]
  %s6 = inlined_call_operand.vmem [shape: bf16[128,128], index: 6, kind: input, shape index: {}]
  %s7 = inlined_call_operand.vmem [shape: f32[1,128], index: 7, kind: input, shape index: {}]
  %s8 = inlined_call_operand.vmem [shape: bf16[128,4], index: 8, kind: input, shape index: {}]
  %s9 = inlined_call_operand.vmem [shape: f32[1,4], index: 9, kind: input, shape index: {}]
  %s10 = inlined_call_operand.vmem [shape: f32[16,8], index: 10, kind: output, shape index: {}]
  %s11 = sld [smem:[#allocation0]]
  $region50: #{np_transition_prior.1} parent=0
    _
  %s13 = ssub.s32 1, %s11
  %s14 = scalar_select 0, %s13, %s11
  // Predicated region
  $region2: #{np_transition_prior.1} parent=0 // pred_check
    _
  $region3: #{np_transition_prior.1} parent=0 // pred_check_branch
    %16 = sbr.rel (0) target = $region5
  $region4: #{np_transition_prior.1} parent=0 // pred_region
    _
  $region5: #{np_transition_prior.1} parent=0 // pred_fallthru
    _
  // Predicated region
  $region6: #{np_transition_prior.1} parent=0 // pred_check
    _
  $region7: #{np_transition_prior.1} parent=0 // pred_check_branch
    %18 = sbr.rel (0) target = $region9
  $region8: #{np_transition_prior.1} parent=0 // pred_region
    _
  $region9: #{np_transition_prior.1} parent=0 // pred_fallthru
    _
  // Predicated region
  $region10: #{np_transition_prior.1} parent=0 // pred_check
    _
  $region11: #{np_transition_prior.1} parent=0 // pred_check_branch
    %20 = sbr.rel (0) target = $region13
  $region12: #{np_transition_prior.1} parent=0 // pred_region
    _
  $region13: #{np_transition_prior.1} parent=0 // pred_fallthru
    _
  // Predicated region
  $region14: #{np_transition_prior.1} parent=0 // pred_check
    _
  $region15: #{np_transition_prior.1} parent=0 // pred_check_branch
    %22 = sbr.rel (0) target = $region17
  $region16: #{np_transition_prior.1} parent=0 // pred_region
    _
  $region17: #{np_transition_prior.1} parent=0 // pred_fallthru
    _
  // Predicated region
  $region18: #{np_transition_prior.1} parent=0 // pred_check
    _
  $region19: #{np_transition_prior.1} parent=0 // pred_check_branch
    %24 = sbr.rel (0) target = $region21
  $region20: #{np_transition_prior.1} parent=0 // pred_region
    _
  $region21: #{np_transition_prior.1} parent=0 // pred_fallthru
    _
  // Predicated region
  $region22: #{np_transition_prior.1} parent=0 // pred_check
    _
  $region23: #{np_transition_prior.1} parent=0 // pred_check_branch
    %26 = sbr.rel (0) target = $region25
  $region24: #{np_transition_prior.1} parent=0 // pred_region
    _
  $region25: #{np_transition_prior.1} parent=0 // pred_fallthru
    _
  // Predicated region
  $region26: #{np_transition_prior.1} parent=0 // pred_check
    _
  $region27: #{np_transition_prior.1} parent=0 // pred_check_branch
    %28 = sbr.rel (0) target = $region29
  $region28: #{np_transition_prior.1} parent=0 // pred_region
    _
  $region29: #{np_transition_prior.1} parent=0 // pred_fallthru
    _
  // Predicated region
  $region30: #{np_transition_prior.1} parent=0 // pred_check
    _
  $region31: #{np_transition_prior.1} parent=0 // pred_check_branch
    %30 = sbr.rel (0) target = $region33
  $region32: #{np_transition_prior.1} parent=0 // pred_region
    _
  $region33: #{np_transition_prior.1} parent=0 // pred_fallthru
    _
  // Predicated region
  $region34: #{np_transition_prior.1} parent=0 // pred_check
    _
  $region35: #{np_transition_prior.1} parent=0 // pred_check_branch
    %32 = sbr.rel (0) target = $region37
  $region36: #{np_transition_prior.1} parent=0 // pred_region
    _
  $region37: #{np_transition_prior.1} parent=0 // pred_fallthru
    _
  // Predicated region
  $region38: #{np_transition_prior.1} parent=0 // pred_check
    _
  $region39: #{np_transition_prior.1} parent=0 // pred_check_branch
    %34 = sbr.rel (0) target = $region41
  $region40: #{np_transition_prior.1} parent=0 // pred_region
    _
  $region41: #{np_transition_prior.1} parent=0 // pred_fallthru
    _
  %v36 = vld [vmem:[%s0] sm:$0xf]
  %v37 = vld [vmem:[%s0 + $0x4] sm:$0xf]
  %v38 = vld [vmem:[%s1] sm:$0xf]
  %v39 = vld [vmem:[%s1 + $0x4] sm:$0xf]
  %v40 = vld [vmem:[%s3] sm:$0x1]
  %v42 = vperm.slane %v40, 0
  %v46 = vunpack.c.l.b16 %v36
  %v47 = vunpack.c.l.b16 %v37
  %v48 = vpack.c.b16 %v47, %v46
  %v51 = vunpack.c.l.b16 %v38
  %v52 = vunpack.c.l.b16 %v39
  %v53 = vpack.c.b16 %v52, %v51
  %vm55 = vcmask 130048
  %v57 = vsel %vm55, %v48, 0
  %59 = vmatpush.bf16.msra.mxu0 0
  %60 = vmatpush.bf16.msra.mxu0 0
  %61 = vmatpush.bf16.msra.mxu0 0
  %62 = vmatpush.bf16.msra.mxu0 0
  %63 = vmatpush.bf16.msra.mxu0 0
  %64 = vmatpush.bf16.msra.mxu0 0
  %65 = vmatpush.bf16.msra.mxu0 0
  %66 = vmatpush.bf16.msra.mxu0 %v53
  %67 = vmatmul.bf16.gmra.mxu0 %v57
  %v68 = vpop.f32.mrf.mxu0
  %v69 = vadd.f32 %v42, %v68
  %v70 = vpop.f32.mrf.mxu0
  %v71 = vadd.f32 %v42, %v70
  %72 = vdwg.mxu0
  %vm73 = vcmp.ge.f32.partialorder %v69, 0.0
  %vm74 = vcmp.ge.f32.partialorder %v71, 0.0
  %v75 = vmul.f32 %v69, 0.2
  %v76 = vmul.f32 %v71, 0.2
  %v77 = vsel %vm73, %v69, %v75
  %v78 = vsel %vm74, %v71, %v76
  %v79 = vld [vmem:[%s2] sm:$0x1]
  %v80 = vsel %vm73, 1.0, 0.2
  %v81 = vsel %vm74, 1.0, 0.2
  %v83 = vperm.slane %v79, 0
  %v85 = vmul.f32 %v83, %v80
  %v86 = vmul.f32 %v83, %v81
  %v87 = vld [vmem:[%s4] sm:$0xf]
  %v88 = vld [vmem:[%s4 + $0x4] sm:$0xf]
  %v89 = vld [vmem:[%s4 + $0x8] sm:$0xf]
  %v90 = vld [vmem:[%s4 + $0xc] sm:$0xf]
  %v91 = vld [vmem:[%s4 + $0x10] sm:$0xf]
  %v92 = vld [vmem:[%s4 + $0x14] sm:$0xf]
  %v93 = vld [vmem:[%s4 + $0x18] sm:$0xf]
  %v94 = vld [vmem:[%s4 + $0x1c] sm:$0xf]
  %v95 = vld [vmem:[%s4 + $0x20] sm:$0xf]
  %v96 = vld [vmem:[%s4 + $0x24] sm:$0xf]
  %v97 = vld [vmem:[%s4 + $0x28] sm:$0xf]
  %v98 = vld [vmem:[%s4 + $0x2c] sm:$0xf]
  %v99 = vld [vmem:[%s4 + $0x30] sm:$0xf]
  %v100 = vld [vmem:[%s4 + $0x34] sm:$0xf]
  %v101 = vld [vmem:[%s4 + $0x38] sm:$0xf]
  %v102 = vld [vmem:[%s4 + $0x3c] sm:$0xf]
  %v103 = vpack.c.bf16 %v78, %v77
  %v104 = vld [vmem:[%s5] sm:$0x1]
  %v106 = vperm.slane %v104, 0
  %v124 = vunpack.c.l.b16 %v87
  %v125 = vunpack.c.l.b16 %v88
  %v126 = vunpack.c.l.b16 %v89
  %v127 = vunpack.c.l.b16 %v90
  %v128 = vunpack.c.l.b16 %v91
  %v129 = vunpack.c.l.b16 %v92
  %v130 = vunpack.c.l.b16 %v93
  %v131 = vunpack.c.l.b16 %v94
  %v132 = vunpack.c.l.b16 %v95
  %v133 = vunpack.c.l.b16 %v96
  %v134 = vunpack.c.l.b16 %v97
  %v135 = vunpack.c.l.b16 %v98
  %v136 = vunpack.c.l.b16 %v99
  %v137 = vunpack.c.l.b16 %v100
  %v138 = vunpack.c.l.b16 %v101
  %v139 = vunpack.c.l.b16 %v102
  %v140 = vpack.c.b16 %v125, %v124
  %v141 = vpack.c.b16 %v127, %v126
  %v142 = vpack.c.b16 %v129, %v128
  %v143 = vpack.c.b16 %v131, %v130
  %v144 = vpack.c.b16 %v133, %v132
  %v145 = vpack.c.b16 %v135, %v134
  %v146 = vpack.c.b16 %v137, %v136
  %v147 = vpack.c.b16 %v139, %v138
  %156 = vmatpush.bf16.msra.mxu0 %v147
  %157 = vmatpush.bf16.msra.mxu0 %v146
  %158 = vmatpush.bf16.msra.mxu0 %v145
  %159 = vmatpush.bf16.msra.mxu0 %v144
  %160 = vmatpush.bf16.msra.mxu0 %v143
  %161 = vmatpush.bf16.msra.mxu0 %v142
  %162 = vmatpush.bf16.msra.mxu0 %v141
  %163 = vmatpush.bf16.msra.mxu0 %v140
  %164 = vmatmul.bf16.gmra.mxu0 %v103
  %v165 = vpop.f32.mrf.mxu0
  %v166 = vadd.f32 %v106, %v165
  %v167 = vpop.f32.mrf.mxu0
  %v168 = vadd.f32 %v106, %v167
  %169 = vdwg.mxu0
  %v170 = vpack.c.bf16 %v86, %v85
  %171 = vmatpush.bf16.msra.mxu0 %v147
  %172 = vmatpush.bf16.msra.mxu0 %v146
  %173 = vmatpush.bf16.msra.mxu0 %v145
  %174 = vmatpush.bf16.msra.mxu0 %v144
  %175 = vmatpush.bf16.msra.mxu0 %v143
  %176 = vmatpush.bf16.msra.mxu0 %v142
  %177 = vmatpush.bf16.msra.mxu0 %v141
  %178 = vmatpush.bf16.msra.mxu0 %v140
  %179 = vmatmul.bf16.gmra.mxu0 %v170
  %v180 = vpop.f32.mrf.mxu0
  %v181 = vadd.f32 0.0, %v180
  %v182 = vpop.f32.mrf.mxu0
  %v183 = vadd.f32 0.0, %v182
  %184 = vdwg.mxu0
  %vm185 = vcmp.ge.f32.partialorder %v166, 0.0
  %vm186 = vcmp.ge.f32.partialorder %v168, 0.0
  %v187 = vmul.f32 %v166, 0.2
  %v188 = vmul.f32 %v168, 0.2
  %v189 = vsel %vm185, %v166, %v187
  %v190 = vsel %vm186, %v168, %v188
  %v191 = vsel %vm185, 1.0, 0.2
  %v192 = vsel %vm186, 1.0, 0.2
  %v193 = vmul.f32 %v181, %v191
  %v194 = vmul.f32 %v183, %v192
  %v195 = vld [vmem:[%s6] sm:$0xf]
  %v196 = vld [vmem:[%s6 + $0x4] sm:$0xf]
  %v197 = vld [vmem:[%s6 + $0x8] sm:$0xf]
  %v198 = vld [vmem:[%s6 + $0xc] sm:$0xf]
  %v199 = vld [vmem:[%s6 + $0x10] sm:$0xf]
  %v200 = vld [vmem:[%s6 + $0x14] sm:$0xf]
  %v201 = vld [vmem:[%s6 + $0x18] sm:$0xf]
  %v202 = vld [vmem:[%s6 + $0x1c] sm:$0xf]
  %v203 = vld [vmem:[%s6 + $0x20] sm:$0xf]
  %v204 = vld [vmem:[%s6 + $0x24] sm:$0xf]
  %v205 = vld [vmem:[%s6 + $0x28] sm:$0xf]
  %v206 = vld [vmem:[%s6 + $0x2c] sm:$0xf]
  %v207 = vld [vmem:[%s6 + $0x30] sm:$0xf]
  %v208 = vld [vmem:[%s6 + $0x34] sm:$0xf]
  %v209 = vld [vmem:[%s6 + $0x38] sm:$0xf]
  %v210 = vld [vmem:[%s6 + $0x3c] sm:$0xf]
  %v211 = vpack.c.bf16 %v190, %v189
  %v212 = vld [vmem:[%s7] sm:$0x1]
  %v214 = vperm.slane %v212, 0
  %v232 = vunpack.c.l.b16 %v195
  %v233 = vunpack.c.l.b16 %v196
  %v234 = vunpack.c.l.b16 %v197
  %v235 = vunpack.c.l.b16 %v198
  %v236 = vunpack.c.l.b16 %v199
  %v237 = vunpack.c.l.b16 %v200
  %v238 = vunpack.c.l.b16 %v201
  %v239 = vunpack.c.l.b16 %v202
  %v240 = vunpack.c.l.b16 %v203
  %v241 = vunpack.c.l.b16 %v204
  %v242 = vunpack.c.l.b16 %v205
  %v243 = vunpack.c.l.b16 %v206
  %v244 = vunpack.c.l.b16 %v207
  %v245 = vunpack.c.l.b16 %v208
  %v246 = vunpack.c.l.b16 %v209
  %v247 = vunpack.c.l.b16 %v210
  %v248 = vpack.c.b16 %v233, %v232
  %v249 = vpack.c.b16 %v235, %v234
  %v250 = vpack.c.b16 %v237, %v236
  %v251 = vpack.c.b16 %v239, %v238
  %v252 = vpack.c.b16 %v241, %v240
  %v253 = vpack.c.b16 %v243, %v242
  %v254 = vpack.c.b16 %v245, %v244
  %v255 = vpack.c.b16 %v247, %v246
  %264 = vmatpush.bf16.msra.mxu0 %v255
  %265 = vmatpush.bf16.msra.mxu0 %v254
  %266 = vmatpush.bf16.msra.mxu0 %v253
  %267 = vmatpush.bf16.msra.mxu0 %v252
  %268 = vmatpush.bf16.msra.mxu0 %v251
  %269 = vmatpush.bf16.msra.mxu0 %v250
  %270 = vmatpush.bf16.msra.mxu0 %v249
  %271 = vmatpush.bf16.msra.mxu0 %v248
  %272 = vmatmul.bf16.gmra.mxu0 %v211
  %v273 = vpop.f32.mrf.mxu0
  %v274 = vadd.f32 %v214, %v273
  %v275 = vpop.f32.mrf.mxu0
  %v276 = vadd.f32 %v214, %v275
  %277 = vdwg.mxu0
  %v278 = vpack.c.bf16 %v194, %v193
  %279 = vmatpush.bf16.msra.mxu0 %v255
  %280 = vmatpush.bf16.msra.mxu0 %v254
  %281 = vmatpush.bf16.msra.mxu0 %v253
  %282 = vmatpush.bf16.msra.mxu0 %v252
  %283 = vmatpush.bf16.msra.mxu0 %v251
  %284 = vmatpush.bf16.msra.mxu0 %v250
  %285 = vmatpush.bf16.msra.mxu0 %v249
  %286 = vmatpush.bf16.msra.mxu0 %v248
  %287 = vmatmul.bf16.gmra.mxu0 %v278
  %v288 = vpop.f32.mrf.mxu0
  %v289 = vadd.f32 0.0, %v288
  %v290 = vpop.f32.mrf.mxu0
  %v291 = vadd.f32 0.0, %v290
  %292 = vdwg.mxu0
  %vm293 = vcmp.ge.f32.partialorder %v274, 0.0
  %vm294 = vcmp.ge.f32.partialorder %v276, 0.0
  %v295 = vmul.f32 %v274, 0.2
  %v296 = vmul.f32 %v276, 0.2
  %v297 = vsel %vm293, %v274, %v295
  %v298 = vsel %vm294, %v276, %v296
  %v299 = vsel %vm293, 1.0, 0.2
  %v300 = vsel %vm294, 1.0, 0.2
  %v301 = vmul.f32 %v289, %v299
  %v302 = vmul.f32 %v291, %v300
  %v303 = vld [vmem:[%s8] sm:$0xf]
  %v304 = vld [vmem:[%s8 + $0x4] sm:$0xf]
  %v305 = vld [vmem:[%s8 + $0x8] sm:$0xf]
  %v306 = vld [vmem:[%s8 + $0xc] sm:$0xf]
  %v307 = vld [vmem:[%s8 + $0x10] sm:$0xf]
  %v308 = vld [vmem:[%s8 + $0x14] sm:$0xf]
  %v309 = vld [vmem:[%s8 + $0x18] sm:$0xf]
  %v310 = vld [vmem:[%s8 + $0x1c] sm:$0xf]
  %v311 = vld [vmem:[%s8 + $0x20] sm:$0xf]
  %v312 = vld [vmem:[%s8 + $0x24] sm:$0xf]
  %v313 = vld [vmem:[%s8 + $0x28] sm:$0xf]
  %v314 = vld [vmem:[%s8 + $0x2c] sm:$0xf]
  %v315 = vld [vmem:[%s8 + $0x30] sm:$0xf]
  %v316 = vld [vmem:[%s8 + $0x34] sm:$0xf]
  %v317 = vld [vmem:[%s8 + $0x38] sm:$0xf]
  %v318 = vld [vmem:[%s8 + $0x3c] sm:$0xf]
  %v319 = vpack.c.bf16 %v298, %v297
  %v320 = vld [vmem:[%s9] sm:$0x1]
  %v322 = vperm.slane %v320, 0
  %v340 = vunpack.c.l.b16 %v303
  %v341 = vunpack.c.l.b16 %v304
  %v342 = vunpack.c.l.b16 %v305
  %v343 = vunpack.c.l.b16 %v306
  %v344 = vunpack.c.l.b16 %v307
  %v345 = vunpack.c.l.b16 %v308
  %v346 = vunpack.c.l.b16 %v309
  %v347 = vunpack.c.l.b16 %v310
  %v348 = vunpack.c.l.b16 %v311
  %v349 = vunpack.c.l.b16 %v312
  %v350 = vunpack.c.l.b16 %v313
  %v351 = vunpack.c.l.b16 %v314
  %v352 = vunpack.c.l.b16 %v315
  %v353 = vunpack.c.l.b16 %v316
  %v354 = vunpack.c.l.b16 %v317
  %v355 = vunpack.c.l.b16 %v318
  %v356 = vpack.c.b16 %v341, %v340
  %v357 = vpack.c.b16 %v343, %v342
  %v358 = vpack.c.b16 %v345, %v344
  %v359 = vpack.c.b16 %v347, %v346
  %v360 = vpack.c.b16 %v349, %v348
  %v361 = vpack.c.b16 %v351, %v350
  %v362 = vpack.c.b16 %v353, %v352
  %v363 = vpack.c.b16 %v355, %v354
  %372 = vmatpush.bf16.msra.mxu0 %v363
  %373 = vmatpush.bf16.msra.mxu0 %v362
  %374 = vmatpush.bf16.msra.mxu0 %v361
  %375 = vmatpush.bf16.msra.mxu0 %v360
  %376 = vmatpush.bf16.msra.mxu0 %v359
  %377 = vmatpush.bf16.msra.mxu0 %v358
  %378 = vmatpush.bf16.msra.mxu0 %v357
  %379 = vmatpush.bf16.msra.mxu0 %v356
  %380 = vmatmul.bf16.gmra.mxu0 %v319
  %v381 = vpop.f32.mrf.mxu0
  %v382 = vadd.f32 %v322, %v381
  %v383 = vpop.f32.mrf.mxu0
  %v384 = vadd.f32 %v322, %v383
  %385 = vdwg.mxu0
  %v386 = vpack.c.bf16 %v302, %v301
  %387 = vmatpush.bf16.msra.mxu0 %v363
  %388 = vmatpush.bf16.msra.mxu0 %v362
  %389 = vmatpush.bf16.msra.mxu0 %v361
  %390 = vmatpush.bf16.msra.mxu0 %v360
  %391 = vmatpush.bf16.msra.mxu0 %v359
  %392 = vmatpush.bf16.msra.mxu0 %v358
  %393 = vmatpush.bf16.msra.mxu0 %v357
  %394 = vmatpush.bf16.msra.mxu0 %v356
  %395 = vmatmul.bf16.gmra.mxu0 %v386
  %v396 = vpop.f32.mrf.mxu0
  %v397 = vadd.f32 0.0, %v396
  %v398 = vpop.f32.mrf.mxu0
  %v399 = vadd.f32 0.0, %v398
  %400 = vdwg.mxu0
  %v401 = vand.u32 2147483647, %v397
  %v402 = vand.u32 2147483647, %v399
  %v403 = vlog2.pop %v401
  %v404 = vmul.f32 %v403, 0.6931472
  %v405 = vlog2.pop %v402
  %v406 = vmul.f32 %v405, 0.6931472
  %409 = vrot.lane.b32.xlu0 %v404, 4
  %v410 = vpop.permute.xlu0 %409
  %411 = vrot.lane.b32.xlu0 %v406, 4
  %v412 = vpop.permute.xlu0 %411
  %vm415 = vcmask 31744
  %v416 = vsel %vm415, %v382, %v410
  %v417 = vsel %vm415, %v384, %v412
  %vm418 = vcmask 64512
  %419 = vst.msk [vmem:[%s10] sm:$0xff] %vm418, %v416
  %420 = vst.msk [vmem:[%s10 + $0x8] sm:$0xff] %vm418, %v417
  // Predicated region
  $region42: #{np_transition_prior.1} parent=0 // pred_check
    _
  $region43: #{np_transition_prior.1} parent=0 // pred_check_branch
    %422 = sbr.rel (0) target = $region45
  $region44: #{np_transition_prior.1} parent=0 // pred_region
    _
  $region45: #{np_transition_prior.1} parent=0 // pred_fallthru
    _
  // Predicated region
  $region46: #{np_transition_prior.1} parent=0 // pred_check
    _
  $region47: #{np_transition_prior.1} parent=0 // pred_check_branch
    %424 = sbr.rel (0) target = $region49
  $region48: #{np_transition_prior.1} parent=0 // pred_region
    _
  $region49: #{np_transition_prior.1} parent=0 // pred_fallthru
    _

</llo_original>
